<compile_context>
chip_gen: v7x
topology: tpu7x:2x2x1
jax: 0.10.0
libtpu: 0.0.40
codegen_flags: <defaults>
</compile_context>

<pallas_src>
import functools

import jax
import jax.numpy as jnp
from jax.experimental import pallas as pl
from jax.experimental.pallas import tpu as pltpu


def _round_up(x, m):
    return (x + m - 1) // m * m


def _cdiv(a, b):
    return -(-a // b)


def _choose_tile_rows(seq_len, max_rows):
    """Pick (tile_rows, num_tiles) over the final sequence (CLS + patches).

    A single full-extent tile needs no 8-alignment (block == full array dim);
    otherwise use the fewest 8-aligned tiles of size <= max_rows.  The last
    tile may be partial (Pallas masks the boundary load/store), so no
    sequence padding or post-slice is required in the wrapper.
    """
    if seq_len <= max_rows:
        return seq_len, 1
    num = _cdiv(seq_len, max_rows)
    tile = _round_up(_cdiv(seq_len, num), 8)
    return tile, _cdiv(seq_len, tile)


def _embed_kernel(patches_ref, w_ref, bias_ref, cls_ref, pos_ref, o_ref):
    """No-mask variant.  One grid step == one (seq-tile, batch) pair.

    patches_ref : (TN, K)  flattened patches (row 0 of tile 0 is a dummy row)
    w_ref       : (K, Hd)  projection weight (conv weight reshaped)
    bias_ref    : (1, Hd)  projection bias (f32)
    cls_ref     : (1, Hd)  cls token (f32)
    pos_ref     : (TN, Hd) position embeddings for this tile (f32, incl. row 0)
    o_ref       : (TN, Hd) output rows of the final (B, N+1, Hd) tensor
    """
    proj = jnp.dot(patches_ref[...], w_ref[...],
                   preferred_element_type=jnp.float32)
    proj = proj + bias_ref[...] + pos_ref[...]
    o_ref[...] = proj.astype(o_ref.dtype)

    @pl.when(pl.program_id(0) == 0)
    def _():
        # Sequence row 0 is the CLS token: overwrite the dummy-row projection
        # with cls_token + pos[0].
        o_ref[0:1, :] = (cls_ref[...] + pos_ref[0:1, :]).astype(o_ref.dtype)


def _embed_kernel_masked(patches_ref, w_ref, bias_ref, cls_ref, mask_tok_ref,
                         pos_ref, mask_ref, o_ref):
    """Masked variant: torch.where(bool_masked_pos[..., None], mask_token, x)
    implemented as a fused VPU blend with a {0., 1.} float mask."""
    proj = jnp.dot(patches_ref[...], w_ref[...],
                   preferred_element_type=jnp.float32)
    proj = proj + bias_ref[...]
    proj = proj + mask_ref[...] * (mask_tok_ref[...] - proj)
    proj = proj + pos_ref[...]
    o_ref[...] = proj.astype(o_ref.dtype)

    @pl.when(pl.program_id(0) == 0)
    def _():
        o_ref[0:1, :] = (cls_ref[...] + pos_ref[0:1, :]).astype(o_ref.dtype)


def dinov2_embeddings(pixel_values, params, patch_size, bool_masked_pos=None,
                      *, compute_dtype=None, out_dtype=None, tile_rows=512,
                      vmem_work_budget_bytes=20 * 1024 * 1024):
    """Forward pass of Dinov2Embeddings (non-interpolated pos-emb path).

    compute_dtype defaults to the projection-weight dtype (PyTorch casts the
    pixels to it); pass jnp.bfloat16 (or bf16 weights) to halve the dominant
    HBM streams — bias / pos / cls stay f32 and the MXU accumulates in f32.
    """
    B, C, H, W = pixel_values.shape
    P = patch_size
    Hp, Wp = H // P, W // P
    N = Hp * Wp
    S = N + 1
    Hd = params["proj_w"].shape[0]          # conv weight: (Hd, C, P, P)
    K = C * P * P

    w_dtype = params["proj_w"].dtype
    if out_dtype is None:
        out_dtype = w_dtype                  # PyTorch: output dtype == weight dtype
    if compute_dtype is None:
        compute_dtype = w_dtype

    pos_table = params["pos_emb"].reshape(-1, Hd).astype(jnp.float32)  # (S, Hd)
    # interpolate_pos_encoding fast path: square image & num_patches matches
    # the stored position table -> use position_embeddings as-is.
    assert H == W and pos_table.shape[0] == S, \
        "only the non-interpolated position-embedding fast path is supported"
    # TODO(synk): bicubic interpolation branch of interpolate_pos_encoding not implemented.

    # --- glue: extract non-overlapping patches, flattened as (C, ph, pw) to
    # match the Conv2d weight memory order.  A dummy zero row is prepended so
    # the kernel output is already the final CLS-prefixed layout.
    # TODO(synk): this transpose/pad still costs one HBM round trip; fusing it
    # into the kernel (in-kernel relayout of row-of-patch blocks or
    # allow_input_fusion) is future work.
    x = pixel_values.astype(compute_dtype).reshape(B, C, Hp, P, Wp, P)
    x = x.transpose(0, 2, 4, 1, 3, 5)        # (B, Hp, Wp, C, P, P)
    patches = x.reshape(B, N, K)
    patches = jnp.pad(patches, ((0, 0), (1, 0), (0, 0)))       # (B, S, K)

    w = params["proj_w"].reshape(Hd, K).T.astype(compute_dtype)  # (K, Hd)
    bias = params["proj_b"].reshape(1, Hd).astype(jnp.float32)
    cls_tok = params["cls_token"].reshape(1, Hd).astype(jnp.float32)

    c_isz = jnp.dtype(compute_dtype).itemsize
    o_isz = jnp.dtype(out_dtype).itemsize
    masked = bool_masked_pos is not None

    # --- tile selection under an explicit VMEM working-set budget -----------
    lane = lambda n: _round_up(n, 128)
    # Streamed per-row bytes (double-buffered): patches + pos + out (+ mask).
    row_bytes = 2 * (lane(K) * c_isz + lane(Hd) * 4 + lane(Hd) * o_isz)
    if masked:
        row_bytes += 2 * 128 * 4
    # Grid-invariant blocks (weight, bias, cls, mask token); Pallas still
    # double-buffers them, so count them twice.  (pipeline_mode=pl.Buffered(1)
    # would halve this on v7x; kept off here for maximum portability.)
    const_bytes = 2 * (_round_up(K, 8) * lane(Hd) * c_isz + 3 * 8 * lane(Hd) * 4)
    avail_rows = max(vmem_work_budget_bytes - const_bytes, 8 * row_bytes) // row_bytes
    max_rows = max(8, min(_round_up(tile_rows, 8), (avail_rows // 8) * 8))
    TN, n_tiles = _choose_tile_rows(S, max_rows)
    work_bytes = const_bytes + TN * row_bytes

    # Batch innermost: the pos tile's block index only changes on the slow
    # axis, so it is DMA'd once per tile (S*Hd bytes total), not once per
    # (tile, batch) step.  Both axes are independent -> "parallel" for megacore.
    grid = (n_tiles, B)
    out_shape = jax.ShapeDtypeStruct((B, S, Hd), out_dtype)
    out_spec = pl.BlockSpec((None, TN, Hd), lambda t, b: (b, t, 0))
    pos_spec = pl.BlockSpec((TN, Hd), lambda t, b: (t, 0))
    common_in_specs = [
        pl.BlockSpec((None, TN, K), lambda t, b: (b, t, 0)),   # patches (streamed)
        pl.BlockSpec((K, Hd), lambda t, b: (0, 0)),            # weight (resident)
        pl.BlockSpec((1, Hd), lambda t, b: (0, 0)),            # bias   (resident)
        pl.BlockSpec((1, Hd), lambda t, b: (0, 0)),            # cls    (resident)
    ]

    # Advisory cost: each HBM operand is now fetched once (pos/weight) or once
    # per batch (patches/mask/out).
    bytes_accessed = (B * S * K * c_isz + K * Hd * c_isz + S * Hd * 4
                      + 2 * Hd * 4 + B * S * Hd * o_isz
                      + (B * S * 4 if masked else 0))
    cost = pl.CostEstimate(flops=2 * B * n_tiles * TN * K * Hd,
                           transcendentals=0,
                           bytes_accessed=int(bytes_accessed))
    cparams = pltpu.CompilerParams(
        dimension_semantics=("parallel", "parallel"),
        vmem_limit_bytes=int(min(max(work_bytes + (8 << 20), 32 << 20), 100 << 20)),
    )

    if not masked:
        return pl.pallas_call(
            _embed_kernel,
            out_shape=out_shape,
            grid=grid,
            in_specs=common_in_specs + [pos_spec],
            out_specs=out_spec,
            compiler_params=cparams,
            cost_estimate=cost,
        )(patches, w, bias, cls_tok, pos_table)

    # {0,1} float mask with an extra leading row (CLS position is never masked;
    # tile 0 overwrites row 0 anyway).
    mask = bool_masked_pos.reshape(B, N, 1).astype(jnp.float32)
    mask = jnp.pad(mask, ((0, 0), (1, 0), (0, 0)))             # (B, S, 1)
    mask_tok = params["mask_token"].reshape(1, Hd).astype(jnp.float32)
    return pl.pallas_call(
        _embed_kernel_masked,
        out_shape=out_shape,
        grid=grid,
        in_specs=common_in_specs + [
            pl.BlockSpec((1, Hd), lambda t, b: (0, 0)),          # mask token
            pos_spec,                                            # pos tile
            pl.BlockSpec((None, TN, 1), lambda t, b: (b, t, 0)), # mask stream
        ],
        out_specs=out_spec,
        compiler_params=cparams,
        cost_estimate=cost,
    )(patches, w, bias, cls_tok, mask_tok, pos_table, mask)
    # Dropout(hidden_dropout_prob) is identity in eval / p=0.


def init_params(key, *, num_channels, hidden_size, patch_size, num_patches):
    k0, k1, k2, k3 = jax.random.split(key, 4)
    return {
        # nn.Conv2d(num_channels, hidden_size, kernel=patch, stride=patch)
        "proj_w": jax.random.normal(
            k0, (hidden_size, num_channels, patch_size, patch_size),
            dtype=jnp.float32) * 0.02,
        "proj_b": jax.random.normal(k1, (hidden_size,), dtype=jnp.float32) * 0.02,
        # nn.Parameter(torch.randn(1, 1, hidden_size))
        "cls_token": jax.random.normal(k2, (1, 1, hidden_size), dtype=jnp.float32),
        # nn.Parameter(torch.zeros(1, hidden_size))
        "mask_token": jnp.zeros((1, hidden_size), dtype=jnp.float32),
        # nn.Parameter(torch.randn(1, num_patches + 1, hidden_size))
        "pos_emb": jax.random.normal(
            k3, (1, num_patches + 1, hidden_size), dtype=jnp.float32),
    }


if __name__ == "__main__":
    # Small config consistent with the module: image 16x16, patch 4 -> 16 patches.
    B, C, IMG, PATCH, HIDDEN = 2, 4, 16, 4, 32
    NUM_PATCHES = (IMG // PATCH) * (IMG // PATCH)

    key = jax.random.PRNGKey(0)
    k_x, k_p, k_m = jax.random.split(key, 3)
    pixel_values = jax.random.normal(k_x, (B, C, IMG, IMG), dtype=jnp.float32)
    params = init_params(k_p, num_channels=C, hidden_size=HIDDEN,
                         patch_size=PATCH, num_patches=NUM_PATCHES)
    bool_masked = jax.random.bernoulli(k_m, 0.3, (B, NUM_PATCHES))

    fwd = jax.jit(functools.partial(dinov2_embeddings, patch_size=PATCH))
    out = jax.block_until_ready(fwd(pixel_values, params))
    out_m = jax.block_until_ready(
        fwd(pixel_values, params, bool_masked_pos=bool_masked))

    # bf16 operand path (halves the patches/weight HBM streams; f32 MXU
    # accumulation, f32 bias/pos) — smoke run + loose check.
    fwd_bf16 = jax.jit(functools.partial(
        dinov2_embeddings, patch_size=PATCH, compute_dtype=jnp.bfloat16))
    out_bf16 = jax.block_until_ready(fwd_bf16(pixel_values, params))

    # Plain-JAX reference with PyTorch semantics.
    Hp = IMG // PATCH
    x = pixel_values.reshape(B, C, Hp, PATCH, Hp, PATCH)
    x = x.transpose(0, 2, 4, 1, 3, 5).reshape(B, NUM_PATCHES, C * PATCH * PATCH)
    w = params["proj_w"].reshape(HIDDEN, -1).T
    proj = jnp.einsum("bnk,kh->bnh", x, w,
                      precision=jax.lax.Precision.HIGHEST)
    proj = proj + params["proj_b"][None, None, :]
    proj_masked = jnp.where(bool_masked[..., None],
                            params["mask_token"][None], proj)
    cls = jnp.broadcast_to(params["cls_token"], (B, 1, HIDDEN))
    ref = jnp.concatenate([cls, proj], axis=1) + params["pos_emb"]
    ref_m = jnp.concatenate([cls, proj_masked], axis=1) + params["pos_emb"]

    assert out.shape == (B, NUM_PATCHES + 1, HIDDEN)
    assert out.dtype == jnp.float32
    assert out_m.shape == (B, NUM_PATCHES + 1, HIDDEN)
    assert out_bf16.shape == (B, NUM_PATCHES + 1, HIDDEN)
    assert jnp.allclose(out, ref, atol=1e-5, rtol=1e-5)
    assert jnp.allclose(out_m, ref_m, atol=1e-5, rtol=1e-5)
    assert jnp.allclose(out_bf16, ref, atol=5e-2, rtol=5e-2)
    print("KERNEL_OK")
</pallas_src>

<mosaic_0001>
module attributes {stable_mosaic.version = 11 : i64} {
  func.func @_embed_kernel(%arg0: i32, %arg1: i32, %arg2: memref<1x17x64xf32, #tpu.memory_space<vmem>>, %arg3: memref<64x32xf32, #tpu.memory_space<vmem>>, %arg4: memref<1x32xf32, #tpu.memory_space<vmem>>, %arg5: memref<1x32xf32, #tpu.memory_space<vmem>>, %arg6: memref<17x32xf32, #tpu.memory_space<vmem>>, %arg7: memref<1x17x32xf32, #tpu.memory_space<vmem>>) attributes {dimension_semantics = [#tpu.dimension_semantics<parallel>, #tpu.dimension_semantics<parallel>], iteration_bounds = array<i64: 1, 2>, scalar_prefetch = 0 : i64, scratch_operands = 0 : i64, tpu.core_type = #tpu.core_type<tc>, window_params = [{transform_indices = @transform_0, window_bounds = array<i64: 1, 17, 64>}, {pipeline_mode = #tpu.pipeline_mode<synchronous>, transform_indices = @transform_1, window_bounds = array<i64: 64, 32>}, {pipeline_mode = #tpu.pipeline_mode<synchronous>, transform_indices = @transform_2, window_bounds = array<i64: 1, 32>}, {pipeline_mode = #tpu.pipeline_mode<synchronous>, transform_indices = @transform_3, window_bounds = array<i64: 1, 32>}, {transform_indices = @transform_4, window_bounds = array<i64: 17, 32>}, {transform_indices = @transform_5, window_bounds = array<i64: 1, 17, 32>}]} {
    %c0 = arith.constant 0 : index
    %c0_0 = arith.constant 0 : index
    %c0_1 = arith.constant 0 : index
    %0 = vector.load %arg2[%c0, %c0_0, %c0_1] : memref<1x17x64xf32, #tpu.memory_space<vmem>>, vector<1x17x64xf32>
    %1 = vector.shape_cast %0 : vector<1x17x64xf32> to vector<17x64xf32>
    %c0_2 = arith.constant 0 : index
    %c0_3 = arith.constant 0 : index
    %2 = vector.load %arg3[%c0_2, %c0_3] : memref<64x32xf32, #tpu.memory_space<vmem>>, vector<64x32xf32>
    %cst = arith.constant dense<0.000000e+00> : vector<17x32xf32>
    %3 = tpu.matmul %1, %2, %cst {dimension_numbers = #tpu.dot_dimension_numbers<[1], [0], [0], [1], [0, 0, 1, 1], [], []>} : vector<17x64xf32>, vector<64x32xf32>, vector<17x32xf32> -> vector<17x32xf32>
    %c0_4 = arith.constant 0 : index
    %c0_5 = arith.constant 0 : index
    %4 = vector.load %arg4[%c0_4, %c0_5] : memref<1x32xf32, #tpu.memory_space<vmem>>, vector<1x32xf32>
    %5 = vector.broadcast %4 : vector<1x32xf32> to vector<17x32xf32>
    %6 = arith.addf %3, %5 : vector<17x32xf32>
    %c0_6 = arith.constant 0 : index
    %c0_7 = arith.constant 0 : index
    %7 = vector.load %arg6[%c0_6, %c0_7] : memref<17x32xf32, #tpu.memory_space<vmem>>, vector<17x32xf32>
    %8 = arith.addf %6, %7 : vector<17x32xf32>
    %c0_8 = arith.constant 0 : index
    %c0_9 = arith.constant 0 : index
    %c0_10 = arith.constant 0 : index
    %9 = vector.load %arg7[%c0_8, %c0_9, %c0_10] : memref<1x17x32xf32, #tpu.memory_space<vmem>>, vector<1x17x32xf32>
    %10 = vector.shape_cast %9 : vector<1x17x32xf32> to vector<17x32xf32>
    %11 = vector.shape_cast %8 : vector<17x32xf32> to vector<1x17x32xf32>
    tpu.vector_store %arg7[%c0_8, %c0_9, %c0_10], %11 {strides = array<i32>} : memref<1x17x32xf32, #tpu.memory_space<vmem>>, vector<1x17x32xf32>,
    %c0_i32 = arith.constant 0 : i32
    %12 = arith.cmpi eq, %arg0, %c0_i32 : i32
    %13 = arith.extui %12 : i1 to i32
    %c0_i32_11 = arith.constant 0 : i32
    %14 = arith.cmpi ne, %13, %c0_i32_11 : i32
    scf.if %14 {
      %c0_12 = arith.constant 0 : index
      %c0_13 = arith.constant 0 : index
      %15 = vector.load %arg5[%c0_12, %c0_13] : memref<1x32xf32, #tpu.memory_space<vmem>>, vector<1x32xf32>
      %c0_14 = arith.constant 0 : index
      %c0_15 = arith.constant 0 : index
      %16 = vector.load %arg6[%c0_14, %c0_15] : memref<17x32xf32, #tpu.memory_space<vmem>>, vector<1x32xf32>
      %17 = arith.addf %15, %16 : vector<1x32xf32>
      %c0_16 = arith.constant 0 : index
      %c0_17 = arith.constant 0 : index
      %c0_18 = arith.constant 0 : index
      %18 = vector.load %arg7[%c0_16, %c0_17, %c0_18] : memref<1x17x32xf32, #tpu.memory_space<vmem>>, vector<1x1x32xf32>
      %19 = vector.shape_cast %18 : vector<1x1x32xf32> to vector<1x32xf32>
      %20 = vector.shape_cast %17 : vector<1x32xf32> to vector<1x1x32xf32>
      tpu.vector_store %arg7[%c0_16, %c0_17, %c0_18], %20 {strides = array<i32>} : memref<1x17x32xf32, #tpu.memory_space<vmem>>, vector<1x1x32xf32>,
    } else {
    }
    return
  }
  func.func @transform_0(%arg0: i32, %arg1: i32) -> (i32, i32, i32) {
    %c0_i32 = arith.constant 0 : i32
    %c0_i32_0 = arith.constant 0 : i32
    return %arg1, %arg0, %c0_i32 : i32, i32, i32
  }
  func.func @transform_1(%arg0: i32, %arg1: i32) -> (i32, i32) {
    %c0_i32 = arith.constant 0 : i32
    %c0_i32_0 = arith.constant 0 : i32
    %c0_i32_1 = arith.constant 0 : i32
    return %c0_i32, %c0_i32_0 : i32, i32
  }
  func.func @transform_2(%arg0: i32, %arg1: i32) -> (i32, i32) {
    %c0_i32 = arith.constant 0 : i32
    %c0_i32_0 = arith.constant 0 : i32
    %c0_i32_1 = arith.constant 0 : i32
    return %c0_i32, %c0_i32_0 : i32, i32
  }
  func.func @transform_3(%arg0: i32, %arg1: i32) -> (i32, i32) {
    %c0_i32 = arith.constant 0 : i32
    %c0_i32_0 = arith.constant 0 : i32
    %c0_i32_1 = arith.constant 0 : i32
    return %c0_i32, %c0_i32_0 : i32, i32
  }
  func.func @transform_4(%arg0: i32, %arg1: i32) -> (i32, i32) {
    %c0_i32 = arith.constant 0 : i32
    %c0_i32_0 = arith.constant 0 : i32
    return %arg0, %c0_i32 : i32, i32
  }
  func.func @transform_5(%arg0: i32, %arg1: i32) -> (i32, i32, i32) {
    %c0_i32 = arith.constant 0 : i32
    %c0_i32_0 = arith.constant 0 : i32
    return %arg1, %arg0, %c0_i32 : i32, i32, i32
  }
}

</mosaic_0001>

<llo_original>
// kernel: dinov2_embeddings.1
$region0: #{dinov2_embeddings.1}
  #allocation0 [shape = 'u32[]', space=smem, size = 0x4, offset = 0x4, fixed_abs, tag = 'smem constant byte address 0x4 - core index']
  #allocation1 [shape = 'u32[144,128]{1,0:T(1,128)}', space=vmem, size = 0x12000, scoped, tag = 'internal scratch']
  %s0 = inlined_call_operand.vmem [shape: f32[2,17,64], index: 0, kind: input, shape index: {}]
  %s1 = inlined_call_operand.vmem [shape: f32[64,32], index: 1, kind: input, shape index: {}]
  %s2 = inlined_call_operand.vmem [shape: f32[1,32], index: 2, kind: input, shape index: {}]
  %s3 = inlined_call_operand.vmem [shape: f32[1,32], index: 3, kind: input, shape index: {}]
  %s4 = inlined_call_operand.vmem [shape: f32[17,32], index: 4, kind: input, shape index: {}]
  %s5 = inlined_call_operand.vmem [shape: f32[2,17,32], index: 5, kind: output, shape index: {}]
  %s6 = sld [smem:[#allocation0]]
  $region57: #{dinov2_embeddings.1} parent=0
    _
  %s8 = ssub.s32 1, %s6
  %s9 = scalar_select 0, %s8, %s6
  loop: start=0, step=1, limit=4
  $region2: #{dinov2_embeddings.1} parent=0 // loop_pre_header
    _
  $region3: #{dinov2_embeddings.1} parent=0 // loop_header
    %s11 = sphi 0, %s15
    %p12 = scmp.ge.s32.totalorder %s11, 4
    %s18 = sphi 0, %s30
    %s19 = sphi 0, %s26
    %s20 = sphi 0, %s18
    %s21 = sphi 0, %s19
    %s22 = sphi 0, %s20
    %s23 = sphi 0, %s21
    %s35 = sphi 0, %s37
    %s38 = sphi 0, %s35
    %s39 = sphi 0, %s38
    %s55 = sphi 0, %s39
    %s59 = sphi 0, %s59
    %s61 = sphi 0, %s59
    %s62 = sphi 0, %s61
    %s76 = sphi 0, %s62
    %s80 = sphi 0, %s80
    %s82 = sphi 0, %s80
    %s83 = sphi 0, %s82
    %s97 = sphi 0, %s83
    %s101 = sphi 0, %s101
    %s103 = sphi 0, %s101
    %s104 = sphi 0, %s103
    %s118 = sphi 0, %s104
    %s124 = sphi 0, %s126
    %s127 = sphi 0, %s124
    %s128 = sphi 0, %s127
    %s144 = sphi 0, %s128
    %s152 = sphi 0, %s154
    %s155 = sphi 0, %s152
    %s156 = sphi 0, %s155
    %s172 = sphi 0, %s156
  $region4: #{dinov2_embeddings.1} parent=0 // loop_header_branch
    %14 = sbr.rel (%p12) target = $region8
  $region5: #{dinov2_embeddings.1} parent=0 // loop_body
    %s16 = ssub.s32 %s11, 1
    %s17 = ssub.s32 %s11, 2
    %s24 = sadd.s32 1, %s19
    %p25 = scmp.ge.s32.totalorder %s24, 2
    %s26 = scalar_select %p25, 0, %s24
    %s27 = sadd.s32 1, %s18
    %s28 = scalar_select %p25, %s27, %s18
    %p29 = scmp.ge.s32.totalorder %s28, 1
    %s30 = scalar_select %p29, 0, %s28
    %s31 = ssub.s32 %s19, %s26
    %s32 = ssub.s32 %s18, %s30
    %s33 = sor.u32 %s31, %s32
    %p34 = scmp.eq.s32.totalorder %s33, 0
    %s36 = sadd.s32 %s35, 1
    %s37 = scalar_select %p34, %s35, %s36
    %p40 = pneg %p34
    %p41 = scmp.eq.s32.totalorder %s11, 1
    %p42 = por %p40, %p41
    %p43 = scmp.ne.s32.totalorder %s35, %s38
    %p44 = scmp.eq.s32.totalorder %s11, 0
    %p45 = por %p43, %p44
    %p46 = scmp.ne.s32.totalorder %s35, %s38
    %p47 = scmp.eq.s32.totalorder %s16, 1
    %p48 = por %p46, %p47
    %p49 = scmp.ne.s32.totalorder %s38, %s39
    %p50 = scmp.eq.s32.totalorder %s16, 0
    %p51 = por %p49, %p50
    %p52 = scmp.ne.s32.totalorder %s38, %s39
    %p53 = scmp.eq.s32.totalorder %s17, 1
    %p54 = por %p52, %p53
    %p56 = scmp.ne.s32.totalorder %s39, %s55
    %p57 = scmp.eq.s32.totalorder %s17, 0
    %p58 = por %p56, %p57
    %s60 = sadd.s32 %s59, 1
    %p63 = scmp.eq.s32.totalorder %s11, 1
    %p64 = scmp.ne.s32.totalorder %s59, %s61
    %p65 = scmp.eq.s32.totalorder %s11, 0
    %p66 = por %p64, %p65
    %p67 = scmp.ne.s32.totalorder %s59, %s61
    %p68 = scmp.eq.s32.totalorder %s16, 1
    %p69 = por %p67, %p68
    %p70 = scmp.ne.s32.totalorder %s61, %s62
    %p71 = scmp.eq.s32.totalorder %s16, 0
    %p72 = por %p70, %p71
    %p73 = scmp.ne.s32.totalorder %s61, %s62
    %p74 = scmp.eq.s32.totalorder %s17, 1
    %p75 = por %p73, %p74
    %p77 = scmp.ne.s32.totalorder %s62, %s76
    %p78 = scmp.eq.s32.totalorder %s17, 0
    %p79 = por %p77, %p78
    %s81 = sadd.s32 %s80, 1
    %p84 = scmp.eq.s32.totalorder %s11, 1
    %p85 = scmp.ne.s32.totalorder %s80, %s82
    %p86 = scmp.eq.s32.totalorder %s11, 0
    %p87 = por %p85, %p86
    %p88 = scmp.ne.s32.totalorder %s80, %s82
    %p89 = scmp.eq.s32.totalorder %s16, 1
    %p90 = por %p88, %p89
    %p91 = scmp.ne.s32.totalorder %s82, %s83
    %p92 = scmp.eq.s32.totalorder %s16, 0
    %p93 = por %p91, %p92
    %p94 = scmp.ne.s32.totalorder %s82, %s83
    %p95 = scmp.eq.s32.totalorder %s17, 1
    %p96 = por %p94, %p95
    %p98 = scmp.ne.s32.totalorder %s83, %s97
    %p99 = scmp.eq.s32.totalorder %s17, 0
    %p100 = por %p98, %p99
    %s102 = sadd.s32 %s101, 1
    %p105 = scmp.eq.s32.totalorder %s11, 1
    %p106 = scmp.ne.s32.totalorder %s101, %s103
    %p107 = scmp.eq.s32.totalorder %s11, 0
    %p108 = por %p106, %p107
    %p109 = scmp.ne.s32.totalorder %s101, %s103
    %p110 = scmp.eq.s32.totalorder %s16, 1
    %p111 = por %p109, %p110
    %p112 = scmp.ne.s32.totalorder %s103, %s104
    %p113 = scmp.eq.s32.totalorder %s16, 0
    %p114 = por %p112, %p113
    %p115 = scmp.ne.s32.totalorder %s103, %s104
    %p116 = scmp.eq.s32.totalorder %s17, 1
    %p117 = por %p115, %p116
    %p119 = scmp.ne.s32.totalorder %s104, %s118
    %p120 = scmp.eq.s32.totalorder %s17, 0
    %p121 = por %p119, %p120
    %s122 = ssub.s32 %s18, %s30
    %p123 = scmp.eq.s32.totalorder %s122, 0
    %s125 = sadd.s32 %s124, 1
    %s126 = scalar_select %p123, %s124, %s125
    %p129 = pneg %p123
    %p130 = scmp.eq.s32.totalorder %s11, 1
    %p131 = por %p129, %p130
    %p132 = scmp.ne.s32.totalorder %s124, %s127
    %p133 = scmp.eq.s32.totalorder %s11, 0
    %p134 = por %p132, %p133
    %p135 = scmp.ne.s32.totalorder %s124, %s127
    %p136 = scmp.eq.s32.totalorder %s16, 1
    %p137 = por %p135, %p136
    %p138 = scmp.ne.s32.totalorder %s127, %s128
    %p139 = scmp.eq.s32.totalorder %s16, 0
    %p140 = por %p138, %p139
    %p141 = scmp.ne.s32.totalorder %s127, %s128
    %p142 = scmp.eq.s32.totalorder %s17, 1
    %p143 = por %p141, %p142
    %p145 = scmp.ne.s32.totalorder %s128, %s144
    %p146 = scmp.eq.s32.totalorder %s17, 0
    %p147 = por %p145, %p146
    %s148 = ssub.s32 %s19, %s26
    %s149 = ssub.s32 %s18, %s30
    %s150 = sor.u32 %s148, %s149
    %p151 = scmp.eq.s32.totalorder %s150, 0
    %s153 = sadd.s32 %s152, 1
    %s154 = scalar_select %p151, %s152, %s153
    %p157 = pneg %p151
    %p158 = scmp.eq.s32.totalorder %s11, 1
    %p159 = por %p157, %p158
    %p160 = scmp.ne.s32.totalorder %s152, %s155
    %p161 = scmp.eq.s32.totalorder %s11, 0
    %p162 = por %p160, %p161
    %p163 = scmp.ne.s32.totalorder %s152, %s155
    %p164 = scmp.eq.s32.totalorder %s16, 1
    %p165 = por %p163, %p164
    %p166 = scmp.ne.s32.totalorder %s155, %s156
    %p167 = scmp.eq.s32.totalorder %s16, 0
    %p168 = por %p166, %p167
    %p169 = scmp.ne.s32.totalorder %s155, %s156
    %p170 = scmp.eq.s32.totalorder %s17, 1
    %p171 = por %p169, %p170
    %p173 = scmp.ne.s32.totalorder %s156, %s172
    %p174 = scmp.eq.s32.totalorder %s17, 0
    %p175 = por %p173, %p174
    %p176 = scmp.le.s32.totalorder 1, %s11
    %p177 = scmp.lt.s32.totalorder %s11, 3
    %p178 = pnand %p176, %p177
    %p179 = pneg %p178
    // Predicated region
    $region9: #{dinov2_embeddings.1} parent=5 // pred_check
      _
    $region10: #{dinov2_embeddings.1} parent=5 // pred_check_branch
      %181 = sbr.rel (%p178) target = $region12
    $region11: #{dinov2_embeddings.1} parent=5 // pred_region
      %s182 = ssub.s32 %s11, 1
      // Predicated region
      $region13: #{dinov2_embeddings.1} parent=11 // pred_check
        %p183 = pneg %p72
      $region14: #{dinov2_embeddings.1} parent=11 // pred_check_branch
        %185 = sbr.rel (%p183) target = $region16
      $region15: #{dinov2_embeddings.1} parent=11 // pred_region
        _
      $region16: #{dinov2_embeddings.1} parent=11 // pred_fallthru
        _
      // Predicated region
      $region17: #{dinov2_embeddings.1} parent=11 // pred_check
        %p186 = pneg %p93
      $region18: #{dinov2_embeddings.1} parent=11 // pred_check_branch
        %188 = sbr.rel (%p186) target = $region20
      $region19: #{dinov2_embeddings.1} parent=11 // pred_region
        _
      $region20: #{dinov2_embeddings.1} parent=11 // pred_fallthru
        _
      // Predicated region
      $region21: #{dinov2_embeddings.1} parent=11 // pred_check
        %p189 = pneg %p114
      $region22: #{dinov2_embeddings.1} parent=11 // pred_check_branch
        %191 = sbr.rel (%p189) target = $region24
      $region23: #{dinov2_embeddings.1} parent=11 // pred_region
        _
      $region24: #{dinov2_embeddings.1} parent=11 // pred_fallthru
        _
      // Predicated region
      $region25: #{dinov2_embeddings.1} parent=11 // pred_check
        %p192 = pneg %p140
      $region26: #{dinov2_embeddings.1} parent=11 // pred_check_branch
        %194 = sbr.rel (%p192) target = $region28
      $region27: #{dinov2_embeddings.1} parent=11 // pred_region
        %s195 = smul.u32 3, %s20
        %p196 = scmp.lt.s32.totalorder %s195, 2
        %s197 = scalar_select %p196, %s195, 2
        %s198 = smul.addr %s197, 8
        %s199 = scalar_lea.vmem %s4, %s198
        %s200 = smul.u32 3, %s20
      $region28: #{dinov2_embeddings.1} parent=11 // pred_fallthru
        _
    $region12: #{dinov2_embeddings.1} parent=5 // pred_fallthru
      _
    %p201 = scmp.lt.s32.totalorder %s11, 2
    // Predicated region
    $region29: #{dinov2_embeddings.1} parent=5 // pred_check
      %p202 = pneg %p201
    $region30: #{dinov2_embeddings.1} parent=5 // pred_check_branch
      %204 = sbr.rel (%p202) target = $region32
    $region31: #{dinov2_embeddings.1} parent=5 // pred_region
      // Predicated region
      $region33: #{dinov2_embeddings.1} parent=31 // pred_check
        %p205 = pneg %p45
      $region34: #{dinov2_embeddings.1} parent=31 // pred_check_branch
        %207 = sbr.rel (%p205) target = $region36
      $region35: #{dinov2_embeddings.1} parent=31 // pred_region
        %s208 = smul.u32 3, %s18
        %p209 = scmp.lt.s32.totalorder %s19, 1
        %s210 = scalar_select %p209, %s19, 1
        %p211 = scmp.lt.s32.totalorder %s208, 2
        %s212 = scalar_select %p211, %s208, 2
        %s213 = smul.addr %s210, 3
        %s214 = sadd.s32 %s212, %s213
        %s215 = smul.addr %s214, 8
        %s216 = scalar_lea.vmem %s0, %s215
        %s217 = smul.u32 3, %s18
      $region36: #{dinov2_embeddings.1} parent=31 // pred_fallthru
        _
    $region32: #{dinov2_embeddings.1} parent=5 // pred_fallthru
      _
    %p218 = scmp.le.s32.totalorder 1, %s11
    %p219 = scmp.lt.s32.totalorder %s11, 3
    %p220 = pnand %p218, %p219
    %p221 = pneg %p220
    // Predicated region
    $region37: #{dinov2_embeddings.1} parent=5 // pred_check
      _
    $region38: #{dinov2_embeddings.1} parent=5 // pred_check_branch
      %223 = sbr.rel (%p220) target = $region40
    $region39: #{dinov2_embeddings.1} parent=5 // pred_region
      %s224 = ssub.s32 %s11, 1
      %s225 = smul.u32 3, %s20
      %p226 = scmp.lt.s32.totalorder %s21, 1
      %s227 = scalar_select %p226, %s21, 1
      %p228 = scmp.lt.s32.totalorder %s225, 2
      %s229 = scalar_select %p228, %s225, 2
      %s230 = smul.addr %s227, 3
      %s231 = sadd.s32 %s229, %s230
      %s232 = smul.addr %s231, 8
      %s233 = scalar_lea.vmem %s0, %s232
      %p234 = pneg %p51
      %p235 = pneg %p48
      %p236 = pneg %p72
      %p237 = pneg %p69
      %p238 = pneg %p93
      %p239 = pneg %p90
      %p240 = pneg %p114
      %p241 = pneg %p111
      %s242 = smul.u32 3, %s20
      %p243 = scmp.lt.s32.totalorder %s242, 2
      %s244 = scalar_select %p243, %s242, 2
      %s245 = smul.addr %s244, 8
      %s246 = scalar_lea.vmem %s4, %s245
      %p247 = pneg %p140
      %p248 = pneg %p137
      %p249 = pneg %p168
      %p250 = pneg %p165
      %s251 = smul.u32 3, %s20
      %p252 = scmp.lt.s32.totalorder %s21, 1
      %s253 = scalar_select %p252, %s21, 1
      %p254 = scmp.lt.s32.totalorder %s251, 2
      %s255 = scalar_select %p254, %s251, 2
      %s256 = smul.addr %s253, 3
      %s257 = sadd.s32 %s255, %s256
      %s258 = smul.addr %s257, 8
      %s259 = scalar_lea.vmem %s5, %s258
      %s260 = smul.u32 3, %s20
      %p261 = scmp.lt.s32.totalorder %s21, 1
      %s262 = scalar_select %p261, %s21, 1
      %p263 = scmp.lt.s32.totalorder %s260, 2
      %s264 = scalar_select %p263, %s260, 2
      %s265 = smul.addr %s262, 3
      %s266 = sadd.s32 %s264, %s265
      %s267 = smul.addr %s266, 8
      %s268 = scalar_lea.vmem %s0, %s267
      %s269 = smul.u32 3, %s20
      %s270 = smul.u32 3, %s20
      %p271 = scmp.lt.s32.totalorder %s270, 2
      %s272 = scalar_select %p271, %s270, 2
      %s273 = smul.addr %s272, 8
      %s274 = scalar_lea.vmem %s4, %s273
      %s275 = smul.u32 3, %s20
      %s276 = smul.u32 3, %s20
      %p277 = scmp.lt.s32.totalorder %s21, 1
      %s278 = scalar_select %p277, %s21, 1
      %p279 = scmp.lt.s32.totalorder %s276, 2
      %s280 = scalar_select %p279, %s276, 2
      %s281 = smul.addr %s278, 3
      %s282 = sadd.s32 %s280, %s281
      %s283 = smul.addr %s282, 8
      %s284 = scalar_lea.vmem %s5, %s283
      %s285 = smul.u32 3, %s20
      %v286 = vld [vmem:[%s268] sm:$0xff]
      %v287 = vld [vmem:[%s268 + $0x8] sm:$0xff]
      %v288 = vld [vmem:[%s268 + $0x10] sm:$0x1]
      %v289 = vld [vmem:[%s1] sm:$0xff]
      %v290 = vld [vmem:[%s1 + $0x8] sm:$0xff]
      %v291 = vld [vmem:[%s1 + $0x10] sm:$0xff]
      %v292 = vld [vmem:[%s1 + $0x18] sm:$0xff]
      %v293 = vld [vmem:[%s1 + $0x20] sm:$0xff]
      %v294 = vld [vmem:[%s1 + $0x28] sm:$0xff]
      %v295 = vld [vmem:[%s1 + $0x30] sm:$0xff]
      %v296 = vld [vmem:[%s1 + $0x38] sm:$0xff]
      %v297 = vld [vmem:[%s2] sm:$0x1]
      %v299 = vlaneseq
      %v300 = vshrl.u32 %v299, 7
      %v301 = vsub.s32 0, %v300
      %v302 = vrot.slane %v297, %v301
      %vm304 = vcmask 523264
      %v306 = vsel %vm304, %v286, 0
      %v309 = vsel %vm304, %v287, 0
      %v312 = vsel %vm304, %v288, 0
      %314 = vmatprep.subr.mxu0 0.0
      %315 = vmatpush1.msra.mxu0 %v289
      %316 = vmatprep.subr.mxu0 0.0
      %317 = vmatpush1.msra.mxu0 %v290
      %318 = vmatprep.subr.mxu0 0.0
      %319 = vmatpush1.msra.mxu0 %v291
      %320 = vmatprep.subr.mxu0 0.0
      %321 = vmatpush1.msra.mxu0 %v292
      %322 = vmatprep.subr.mxu0 0.0
      %323 = vmatpush1.msra.mxu0 %v293
      %324 = vmatprep.subr.mxu0 0.0
      %325 = vmatpush1.msra.mxu0 %v294
      %326 = vmatprep.subr.mxu0 0.0
      %327 = vmatpush1.msra.mxu0 %v295
      %328 = vmatprep.subr.mxu0 0.0
      %329 = vmatpush1.msra.mxu0 %v296
      %330 = vmatprep.subr.mxu0 0.0
      %331 = vmatpush1.msra.mxu0 0.0
      %332 = vmatprep.subr.mxu0 0.0
      %333 = vmatpush1.msra.mxu0 0.0
      %334 = vmatprep.subr.mxu0 0.0
      %335 = vmatpush1.msra.mxu0 0.0
      %336 = vmatprep.subr.mxu0 0.0
      %337 = vmatpush1.msra.mxu0 0.0
      %338 = vmatprep.subr.mxu0 0.0
      %339 = vmatpush1.msra.mxu0 0.0
      %340 = vmatprep.subr.mxu0 0.0
      %341 = vmatpush1.msra.mxu0 0.0
      %342 = vmatprep.subr.mxu0 0.0
      %343 = vmatpush1.msra.mxu0 0.0
      %344 = vmatprep.subr.mxu0 0.0
      %345 = vmatpush1.msra.mxu0 0.0
      %346 = vmatprep.subr.mxu0 0.0
      %347 = vmatpush1.msra.mxu0 0.0
      %348 = vmatprep.subr.mxu0 0.0
      %349 = vmatpush1.msra.mxu0 0.0
      %350 = vmatprep.subr.mxu0 0.0
      %351 = vmatpush1.msra.mxu0 0.0
      %352 = vmatprep.subr.mxu0 0.0
      %353 = vmatpush1.msra.mxu0 0.0
      %354 = vmatprep.subr.mxu0 0.0
      %355 = vmatpush1.msra.mxu0 0.0
      %356 = vmatprep.subr.mxu0 0.0
      %357 = vmatpush1.msra.mxu0 0.0
      %358 = vmatprep.subr.mxu0 0.0
      %359 = vmatpush1.msra.mxu0 0.0
      %360 = vmatprep.subr.mxu0 0.0
      %361 = vmatpush1.msra.mxu0 0.0
      %362 = vmatprep.subr.mxu0 0.0
      %363 = vmatpush1.msra.mxu0 0.0
      %364 = vmatprep.subr.mxu0 0.0
      %365 = vmatpush1.msra.mxu0 0.0
      %366 = vmatprep.subr.mxu0 0.0
      %367 = vmatpush1.msra.mxu0 0.0
      %368 = vmatprep.subr.mxu0 0.0
      %369 = vmatpush1.msra.mxu0 0.0
      %370 = vmatprep.subr.mxu0 0.0
      %371 = vmatpush1.msra.mxu0 0.0
      %372 = vmatprep.subr.mxu0 0.0
      %373 = vmatpush1.msra.mxu0 0.0
      %374 = vmatprep.subr.mxu0 0.0
      %375 = vmatpush1.msra.mxu0 0.0
      %376 = vmatprep.subr.mxu0 0.0
      %377 = vmatpush1.msra.mxu0 0.0
      %378 = vmatprep.mubr.f32.mxu0 0.0
      %379 = vmatmul.mubr.f32.gmra.mrb[0].mxu0 %v306
      %v380 = vpop.f32.mrb[0].mxu0
      %v381 = vadd.f32 %v302, %v380
      %v382 = vpop.f32.mrb[0].mxu0
      %383 = vmatprep.mubr.f32.mxu0 0.0
      %384 = vmatmul.mubr.f32.gmra.mrb[0].mxu0 %v309
      %v385 = vpop.f32.mrb[0].mxu0
      %v386 = vadd.f32 %v302, %v385
      %v387 = vpop.f32.mrb[0].mxu0
      %388 = vmatprep.mubr.f32.mxu0 0.0
      %389 = vmatmul.mubr.f32.gmra.mrb[0].mxu0 %v312
      %v390 = vpop.f32.mrb[0].mxu0
      %v391 = vadd.f32 %v302, %v390
      %v392 = vpop.f32.mrb[0].mxu0
      %393 = vdwg.mxu0
      %v394 = vld [vmem:[%s274] sm:$0xff]
      %v395 = vld [vmem:[%s274 + $0x8] sm:$0xff]
      %v396 = vld [vmem:[%s274 + $0x10] sm:$0x1]
      %v397 = vadd.f32 %v381, %v394
      %v398 = vadd.f32 %v386, %v395
      %v399 = vadd.f32 %v391, %v396
      %vm400 = vcmask 261120
      %401 = vst.msk [vmem:[%s284] sm:$0xff] %vm400, %v397
      %402 = vst.msk [vmem:[%s284 + $0x8] sm:$0xff] %vm400, %v398
      %vm403 = vcmask 253952
      %404 = vst.msk [vmem:[%s284 + $0x10] sm:$0x1] %vm403, %v399
      %p405 = scmp.eq.s32.totalorder %s20, 0
      // Predicated region
      $region41: #{dinov2_embeddings.1} parent=39 // pred_check
        %p406 = pneg %p405
      $region42: #{dinov2_embeddings.1} parent=39 // pred_check_branch
        %408 = sbr.rel (%p406) target = $region44
      $region43: #{dinov2_embeddings.1} parent=39 // pred_region
        %v409 = vld [vmem:[%s3] sm:$0x1]
        %v410 = vld [vmem:[%s274] sm:$0x1]
        %v411 = vadd.f32 %v409, %v410
        %412 = vst.msk [vmem:[%s284] sm:$0x1] %vm403, %v411
      $region44: #{dinov2_embeddings.1} parent=39 // pred_fallthru
        _
      %s413 = smul.u32 3, %s20
      %p414 = scmp.lt.s32.totalorder %s21, 1
      %s415 = scalar_select %p414, %s21, 1
      %p416 = scmp.lt.s32.totalorder %s413, 2
      %s417 = scalar_select %p416, %s413, 2
      %s418 = smul.addr %s415, 3
      %s419 = sadd.s32 %s417, %s418
      %s420 = smul.addr %s419, 8
      %s421 = scalar_lea.vmem %s5, %s420
      // Predicated region
      $region45: #{dinov2_embeddings.1} parent=39 // pred_check
        %p422 = pneg %p165
      $region46: #{dinov2_embeddings.1} parent=39 // pred_check_branch
        %424 = sbr.rel (%p422) target = $region48
      $region47: #{dinov2_embeddings.1} parent=39 // pred_region
        %s425 = smul.u32 3, %s20
      $region48: #{dinov2_embeddings.1} parent=39 // pred_fallthru
        _
    $region40: #{dinov2_embeddings.1} parent=5 // pred_fallthru
      _
    %p426 = scmp.le.s32.totalorder 2, %s11
    // Predicated region
    $region49: #{dinov2_embeddings.1} parent=5 // pred_check
      %p427 = pneg %p426
    $region50: #{dinov2_embeddings.1} parent=5 // pred_check_branch
      %429 = sbr.rel (%p427) target = $region52
    $region51: #{dinov2_embeddings.1} parent=5 // pred_region
      %s430 = ssub.s32 %s11, 2
      // Predicated region
      $region53: #{dinov2_embeddings.1} parent=51 // pred_check
        %p431 = pneg %p171
      $region54: #{dinov2_embeddings.1} parent=51 // pred_check_branch
        %433 = sbr.rel (%p431) target = $region56
      $region55: #{dinov2_embeddings.1} parent=51 // pred_region
        %s434 = smul.u32 3, %s22
        %p435 = scmp.lt.s32.totalorder %s23, 1
        %s436 = scalar_select %p435, %s23, 1
        %p437 = scmp.lt.s32.totalorder %s434, 2
        %s438 = scalar_select %p437, %s434, 2
        %s439 = smul.addr %s436, 3
        %s440 = sadd.s32 %s438, %s439
        %s441 = smul.addr %s440, 8
        %s442 = scalar_lea.vmem %s5, %s441
      $region56: #{dinov2_embeddings.1} parent=51 // pred_fallthru
        _
    $region52: #{dinov2_embeddings.1} parent=5 // pred_fallthru
      _
  $region6: #{dinov2_embeddings.1} parent=0 // loop_footer
    %s15 = sadd.s32 1, %s11
  $region7: #{dinov2_embeddings.1} parent=0 // loop_footer_branch
    %10 = sbr.rel target = $region3
  $region8: #{dinov2_embeddings.1} parent=0 // loop_exit
    _

</llo_original>
